<compile_context>
chip_gen: v6e
topology: v6e:2x2x1
jax: 0.10.0
libtpu: 0.0.40
codegen_flags: <defaults>
</compile_context>

<pallas_src>
import functools

import jax
import jax.numpy as jnp
from jax.experimental import pallas as pl
from jax.experimental.pallas import tpu as pltpu

_PAD_SENTINEL = -(1 << 20)  # padded-row target: never matches any column id in [0, k*C)


def _round_up(x: int, m: int) -> int:
    return ((x + m - 1) // m) * m


def _nll_loss_kernel(pred_ref, tgt_ref, out_ref, acc_ref, *, num_sub, scale):
    """Grid = (P partial sums, N row tiles). acc_ref: per-core resident f32 accumulator."""
    i = pl.program_id(1)

    @pl.when(i == 0)
    def _init():
        acc_ref[...] = jnp.zeros_like(acc_ref)

    pred = pred_ref[...].astype(jnp.float32)   # (tile, L); upcast immediately after load
    tgt = tgt_ref[...]                         # (tile, num_sub) int32, pre-offset by j*C
    tb, lanes = acc_ref.shape
    col_ids = jax.lax.broadcasted_iota(jnp.int32, (tb, lanes), 1)
    # One-hot mask over the packed lane axis: OR of num_sub disjoint per-sub-row compares.
    mask = col_ids == tgt[:, 0:1]
    for j in range(1, num_sub):
        mask = jnp.logical_or(mask, col_ids == tgt[:, j:j + 1])
    # Lane-local VPU accumulate; no cross-lane (XLU) reduce in the hot loop.
    acc_ref[...] += jnp.where(mask, pred, 0.0)

    @pl.when(i == pl.num_programs(1) - 1)
    def _finalize():
        # Single cross-lane reduce for this partial; fold the (-1/B) scale into the store.
        out_ref[0, 0] = jnp.sum(acc_ref[...]) * scale


def get_loss(pred, target, trans_feat=None):
    """JAX/Pallas equivalent of the PyTorch get_loss.forward (F.nll_loss, mean reduction).

    Precondition (same as the PyTorch defaults this module relies on): all targets in [0, C).
    # TODO(synk): ignore_index / class weights / reduction='sum'|'none' variants of
    # F.nll_loss are not implemented (the module only uses the default call).
    """
    del trans_feat  # unused by the reference module
    B, C = pred.shape

    # NOTE: at tiny sizes (e.g. B=8, C=16) this op is a few hundred bytes of work and is
    # dominated by fixed pallas_call/DMA overhead on every TPU generation; in a real model it
    # should be fused into the producing log_softmax / classifier head. The kernel below is
    # written to scale to large B.

    # Lane-dense packing factor: k consecutive rows share one 128-lane row when possible.
    k = 128 // C if (C < 128 and 128 % C == 0) else 1
    L = k * C

    tgt = target.astype(jnp.int32).reshape(B)

    # ---- choose packed-row tile: multiple of 8 sublanes, ~2 MiB f32 per buffer ----
    Bg = -(-B // k)                                   # packed rows before padding
    tile = ((2 << 20) // (L * 4)) // 8 * 8
    tile = max(8, min(4096, tile))
    tile = min(tile, _round_up(Bg, 8))

    # Two partial sums (leading "parallel" axis -> both TensorCores on v7x) if there is more
    # than one tile of work; otherwise a single partial.
    P = 2 if Bg > tile else 1
    Bg_pad = _round_up(Bg, P * tile)
    B_pad = Bg_pad * k
    n_inner = Bg_pad // (P * tile)

    # ---- pad (only when needed) and pack ----
    if B_pad != B:
        pred = jnp.pad(pred, ((0, B_pad - B), (0, 0)))                       # zero rows
        tgt = jnp.pad(tgt, (0, B_pad - B), constant_values=_PAD_SENTINEL)    # never matches
    pred_packed = pred.reshape(Bg_pad, L)             # free: row-major contiguous reshape
    tgt_packed = tgt.reshape(Bg_pad, k) + (jnp.arange(k, dtype=jnp.int32) * C)[None, :]

    scale = -1.0 / float(B)
    kernel = functools.partial(_nll_loss_kernel, num_sub=k, scale=scale)

    partials = pl.pallas_call(
        kernel,
        out_shape=jax.ShapeDtypeStruct((P, 1), jnp.float32),
        grid=(P, n_inner),
        in_specs=[
            pl.BlockSpec((tile, L), lambda p, i: (p * n_inner + i, 0)),
            pl.BlockSpec((tile, k), lambda p, i: (p * n_inner + i, 0)),
        ],
        out_specs=pl.BlockSpec((1, 1), lambda p, i: (p, 0), memory_space=pltpu.SMEM),
        scratch_shapes=[pltpu.VMEM((tile, L), jnp.float32)],
        compiler_params=pltpu.CompilerParams(
            dimension_semantics=("parallel", "arbitrary")),
    )(pred_packed, tgt_packed)
    return jnp.sum(partials)


if __name__ == "__main__":
    key = jax.random.PRNGKey(0)
    k_pred, k_tgt, k_tf = jax.random.split(key, 3)

    # Small shapes matching the PointNet++ classification-head usage.
    B, C, N = 8, 16, 32
    logits = jax.random.normal(k_pred, (B, C), dtype=jnp.float32)
    pred = jax.nn.log_softmax(logits, axis=-1)
    target = jax.random.randint(k_tgt, (B,), 0, C, dtype=jnp.int32)
    trans_feat = jax.random.normal(k_tf, (B, 3, N), dtype=jnp.float32)  # unused

    loss = get_loss(pred, target, trans_feat)
    jax.block_until_ready(loss)
    ref = -jnp.mean(pred[jnp.arange(B), target])
    assert jnp.allclose(loss, ref, rtol=1e-5, atol=1e-6), (loss, ref)

    # Larger check: multi-tile grid, two partial sums, bf16 input, lane-dense packing.
    B2, C2 = 65536, 16
    logits2 = jax.random.normal(jax.random.PRNGKey(1), (B2, C2), dtype=jnp.float32)
    pred2 = jax.nn.log_softmax(logits2, axis=-1).astype(jnp.bfloat16)
    target2 = jax.random.randint(jax.random.PRNGKey(2), (B2,), 0, C2, dtype=jnp.int32)
    loss2 = get_loss(pred2, target2, None)
    jax.block_until_ready(loss2)
    ref2 = -jnp.mean(pred2.astype(jnp.float32)[jnp.arange(B2), target2])
    assert jnp.allclose(loss2, ref2, rtol=1e-3, atol=1e-3), (loss2, ref2)

    # Fallback path: C does not divide 128 and B is odd (exercises padding + k=1 path).
    B3, C3 = 37, 40
    logits3 = jax.random.normal(jax.random.PRNGKey(3), (B3, C3), dtype=jnp.float32)
    pred3 = jax.nn.log_softmax(logits3, axis=-1)
    target3 = jax.random.randint(jax.random.PRNGKey(4), (B3,), 0, C3, dtype=jnp.int32)
    loss3 = get_loss(pred3, target3, None)
    jax.block_until_ready(loss3)
    ref3 = -jnp.mean(pred3[jnp.arange(B3), target3])
    assert jnp.allclose(loss3, ref3, rtol=1e-5, atol=1e-6), (loss3, ref3)

    print("KERNEL_OK")
</pallas_src>

<mosaic_0001>
module attributes {stable_mosaic.version = 11 : i64} {
  func.func @_nll_loss_kernel(%arg0: i32, %arg1: i32, %arg2: memref<8x128xf32, #tpu.memory_space<vmem>>, %arg3: memref<8x8xi32, #tpu.memory_space<vmem>>, %arg4: memref<1x1xf32, #tpu.memory_space<smem>>, %arg5: memref<8x128xf32, #tpu.memory_space<vmem>>) attributes {dimension_semantics = [#tpu.dimension_semantics<parallel>, #tpu.dimension_semantics<arbitrary>], iteration_bounds = array<i64: 1, 1>, scalar_prefetch = 0 : i64, scratch_operands = 1 : i64, tpu.core_type = #tpu.core_type<tc>, window_params = [{transform_indices = @transform_0, window_bounds = array<i64: 8, 128>}, {transform_indices = @transform_1, window_bounds = array<i64: 8, 8>}, {transform_indices = @transform_2, window_bounds = array<i64: 1, 1>}]} {
    %c0_i32 = arith.constant 0 : i32
    %0 = arith.cmpi eq, %arg1, %c0_i32 : i32
    %1 = arith.extui %0 : i1 to i32
    %c0_i32_0 = arith.constant 0 : i32
    %2 = arith.cmpi ne, %1, %c0_i32_0 : i32
    scf.if %2 {
      %cst_10 = arith.constant 0.000000e+00 : f32
      %45 = vector.broadcast %cst_10 : f32 to vector<8x128xf32>
      %c0_11 = arith.constant 0 : index
      %c0_12 = arith.constant 0 : index
      %46 = vector.load %arg5[%c0_11, %c0_12] : memref<8x128xf32, #tpu.memory_space<vmem>>, vector<8x128xf32>
      tpu.vector_store %arg5[%c0_11, %c0_12], %45 {strides = array<i32>} : memref<8x128xf32, #tpu.memory_space<vmem>>, vector<8x128xf32>,
    } else {
    }
    %c0 = arith.constant 0 : index
    %c0_1 = arith.constant 0 : index
    %3 = vector.load %arg2[%c0, %c0_1] : memref<8x128xf32, #tpu.memory_space<vmem>>, vector<8x128xf32>
    %c0_2 = arith.constant 0 : index
    %c0_3 = arith.constant 0 : index
    %4 = vector.load %arg3[%c0_2, %c0_3] : memref<8x8xi32, #tpu.memory_space<vmem>>, vector<8x8xi32>
    %5 = tpu.iota {dimensions = array<i32: 1>} : vector<8x128xi32>
    %6 = vector.extract_strided_slice %4 {offsets = [0, 0], sizes = [8, 1], strides = [1, 1]} : vector<8x8xi32> to vector<8x1xi32>
    %7 = vector.broadcast %6 : vector<8x1xi32> to vector<8x128xi32>
    %8 = arith.cmpi eq, %5, %7 : vector<8x128xi32>
    %9 = vector.extract_strided_slice %4 {offsets = [0, 1], sizes = [8, 1], strides = [1, 1]} : vector<8x8xi32> to vector<8x1xi32>
    %10 = vector.broadcast %9 : vector<8x1xi32> to vector<8x128xi32>
    %11 = arith.cmpi eq, %5, %10 : vector<8x128xi32>
    %12 = arith.ori %8, %11 : vector<8x128xi1>
    %13 = vector.extract_strided_slice %4 {offsets = [0, 2], sizes = [8, 1], strides = [1, 1]} : vector<8x8xi32> to vector<8x1xi32>
    %14 = vector.broadcast %13 : vector<8x1xi32> to vector<8x128xi32>
    %15 = arith.cmpi eq, %5, %14 : vector<8x128xi32>
    %16 = arith.ori %12, %15 : vector<8x128xi1>
    %17 = vector.extract_strided_slice %4 {offsets = [0, 3], sizes = [8, 1], strides = [1, 1]} : vector<8x8xi32> to vector<8x1xi32>
    %18 = vector.broadcast %17 : vector<8x1xi32> to vector<8x128xi32>
    %19 = arith.cmpi eq, %5, %18 : vector<8x128xi32>
    %20 = arith.ori %16, %19 : vector<8x128xi1>
    %21 = vector.extract_strided_slice %4 {offsets = [0, 4], sizes = [8, 1], strides = [1, 1]} : vector<8x8xi32> to vector<8x1xi32>
    %22 = vector.broadcast %21 : vector<8x1xi32> to vector<8x128xi32>
    %23 = arith.cmpi eq, %5, %22 : vector<8x128xi32>
    %24 = arith.ori %20, %23 : vector<8x128xi1>
    %25 = vector.extract_strided_slice %4 {offsets = [0, 5], sizes = [8, 1], strides = [1, 1]} : vector<8x8xi32> to vector<8x1xi32>
    %26 = vector.broadcast %25 : vector<8x1xi32> to vector<8x128xi32>
    %27 = arith.cmpi eq, %5, %26 : vector<8x128xi32>
    %28 = arith.ori %24, %27 : vector<8x128xi1>
    %29 = vector.extract_strided_slice %4 {offsets = [0, 6], sizes = [8, 1], strides = [1, 1]} : vector<8x8xi32> to vector<8x1xi32>
    %30 = vector.broadcast %29 : vector<8x1xi32> to vector<8x128xi32>
    %31 = arith.cmpi eq, %5, %30 : vector<8x128xi32>
    %32 = arith.ori %28, %31 : vector<8x128xi1>
    %33 = vector.extract_strided_slice %4 {offsets = [0, 7], sizes = [8, 1], strides = [1, 1]} : vector<8x8xi32> to vector<8x1xi32>
    %34 = vector.broadcast %33 : vector<8x1xi32> to vector<8x128xi32>
    %35 = arith.cmpi eq, %5, %34 : vector<8x128xi32>
    %36 = arith.ori %32, %35 : vector<8x128xi1>
    %c0_4 = arith.constant 0 : index
    %c0_5 = arith.constant 0 : index
    %37 = vector.load %arg5[%c0_4, %c0_5] : memref<8x128xf32, #tpu.memory_space<vmem>>, vector<8x128xf32>
    %cst = arith.constant 0.000000e+00 : f32
    %38 = vector.broadcast %cst : f32 to vector<8x128xf32>
    %39 = arith.select %36, %3, %38 : vector<8x128xi1>, vector<8x128xf32>
    %40 = arith.addf %37, %39 : vector<8x128xf32>
    %c0_6 = arith.constant 0 : index
    %c0_7 = arith.constant 0 : index
    %41 = vector.load %arg5[%c0_6, %c0_7] : memref<8x128xf32, #tpu.memory_space<vmem>>, vector<8x128xf32>
    tpu.vector_store %arg5[%c0_6, %c0_7], %40 {strides = array<i32>} : memref<8x128xf32, #tpu.memory_space<vmem>>, vector<8x128xf32>,
    %c0_i32_8 = arith.constant 0 : i32
    %42 = arith.cmpi eq, %arg1, %c0_i32_8 : i32
    %43 = arith.extui %42 : i1 to i32
    %c0_i32_9 = arith.constant 0 : i32
    %44 = arith.cmpi ne, %43, %c0_i32_9 : i32
    scf.if %44 {
      %c0_10 = arith.constant 0 : index
      %c0_11 = arith.constant 0 : index
      %45 = vector.load %arg5[%c0_10, %c0_11] : memref<8x128xf32, #tpu.memory_space<vmem>>, vector<8x128xf32>
      %46 = vector.shape_cast %45 : vector<8x128xf32> to vector<1x8x128xf32>
      %cst_12 = arith.constant dense<0.000000e+00> : vector<1xf32>
      %47 = vector.multi_reduction <add>, %46, %cst_12 [1, 2] : vector<1x8x128xf32> to vector<1xf32>
      %48 = vector.shape_cast %47 : vector<1xf32> to vector<1x1x1xf32>
      %49 = vector.extract %48[0, 0, 0] : f32 from vector<1x1x1xf32>
      %cst_13 = arith.constant -1.250000e-01 : f32
      %50 = arith.mulf %49, %cst_13 : f32
      %c0_14 = arith.constant 0 : index
      %c0_15 = arith.constant 0 : index
      %51 = memref.load %arg4[%c0_14, %c0_15] : memref<1x1xf32, #tpu.memory_space<smem>>
      memref.store %50, %arg4[%c0_14, %c0_15] : memref<1x1xf32, #tpu.memory_space<smem>>
    } else {
    }
    return
  }
  func.func @transform_0(%arg0: i32, %arg1: i32) -> (i32, i32) {
    %c1_i32 = arith.constant 1 : i32
    %0 = arith.muli %arg0, %c1_i32 : i32
    %1 = arith.addi %0, %arg1 : i32
    %c0_i32 = arith.constant 0 : i32
    %c0_i32_0 = arith.constant 0 : i32
    return %1, %c0_i32 : i32, i32
  }
  func.func @transform_1(%arg0: i32, %arg1: i32) -> (i32, i32) {
    %c1_i32 = arith.constant 1 : i32
    %0 = arith.muli %arg0, %c1_i32 : i32
    %1 = arith.addi %0, %arg1 : i32
    %c0_i32 = arith.constant 0 : i32
    %c0_i32_0 = arith.constant 0 : i32
    return %1, %c0_i32 : i32, i32
  }
  func.func @transform_2(%arg0: i32, %arg1: i32) -> (i32, i32) {
    %c0_i32 = arith.constant 0 : i32
    %c0_i32_0 = arith.constant 0 : i32
    return %arg0, %c0_i32 : i32, i32
  }
}

</mosaic_0001>

<llo_original>
// kernel: tpu_custom_call.1
$region0: #{tpu_custom_call.1}
  #allocation0 [shape = 'u32[]', space=smem, size = 0x4, offset = 0x4, fixed_abs, tag = 'smem constant byte address 0x4 - core index']
  #allocation1 [shape = 'u32[144,128]{1,0:T(1,128)}', space=vmem, size = 0x12000, scoped, tag = 'internal scratch']
  #allocation2 [shape = 'f32[8,128]{1,0:T(8,128)}', space=vmem, size = 0x1000, scoped, tag = 'scratch operand']
  %s0 = inlined_call_operand.hbm [shape: f32[8,128], index: 0, kind: input, shape index: {}]
  %s1 = inlined_call_operand.hbm [shape: s32[8,8], index: 1, kind: input, shape index: {}]
  %s2 = inlined_call_operand.hbm [shape: f32[1,1], index: 2, kind: output, shape index: {}]
  %s3 = sld [smem:[#allocation0]]
  $region34: #{tpu_custom_call.1} parent=0
    _
  %s5 = ssub.s32 1, %s3
  %s6 = scalar_select 0, %s5, %s3
  $region1: #{tpu_custom_call.1} parent=0
    #allocation3 [shape = 'u8[4096]{0}', space=vmem, size = 0x1000, scoped, tag = 'input window, operand 0, single buffered']
    #allocation4 [shape = 's32[1]{0}', space=sflag, size = 0x4, scoped, tag = 'scoped memory for tpu_custom_call.1']
    #allocation5 [shape = 's32[1]{0}', space=sflag, size = 0x4, scoped, tag = 'scoped memory for tpu_custom_call.1']
    #allocation6 [shape = 'u8[4096]{0}', space=vmem, size = 0x1000, scoped, tag = 'input window, operand 1, single buffered']
    #allocation7 [shape = 's32[1]{0}', space=sflag, size = 0x4, scoped, tag = 'scoped memory for tpu_custom_call.1']
    #allocation8 [shape = 'u8[512]{0}', space=smem, size = 0x200, scoped, tag = 'output window, operand 0, single buffered']
    %7 = vsyncpa [#allocation4], 0
    %8 = vsyncpa [#allocation7], 0
    %9 = vsyncpa [#allocation5], 0
    // Predicated region
    $region2: #{tpu_custom_call.1} parent=1 // pred_check
      _
    $region3: #{tpu_custom_call.1} parent=1 // pred_check_branch
      %11 = sbr.rel (0) target = $region5
    $region4: #{tpu_custom_call.1} parent=1 // pred_region
      %s12 = sadd.s32 0, 0
      %s14 = ssub.s32 128, 128
      %15 = vsyncadd [#allocation4], %s14
      %s16 = smul.addr %s12, 128
      %s17 = scalar_lea.hbm %s0, %s16
      %s19 = sshll.u32 [#allocation3], 4
      %s20 = int_to_ptr.vmem [resolvable:$true] %s19
      %22 = dma.hbm_to_vmem [thread:$0]  %s17, 128, %s20, [#allocation4]
    $region5: #{tpu_custom_call.1} parent=1 // pred_fallthru
      _
    // Predicated region
    $region6: #{tpu_custom_call.1} parent=1 // pred_check
      _
    $region7: #{tpu_custom_call.1} parent=1 // pred_check_branch
      %24 = sbr.rel (0) target = $region9
    $region8: #{tpu_custom_call.1} parent=1 // pred_region
      %s25 = sadd.s32 0, 0
      %s27 = ssub.s32 128, 128
      %28 = vsyncadd [#allocation7], %s27
      %s29 = smul.addr %s25, 128
      %s30 = scalar_lea.hbm %s1, %s29
      %s32 = sshll.u32 [#allocation6], 4
      %s33 = int_to_ptr.vmem [resolvable:$true] %s32
      %35 = dma.hbm_to_vmem [thread:$0]  %s30, 128, %s33, [#allocation7]
    $region9: #{tpu_custom_call.1} parent=1 // pred_fallthru
      _
    // Predicated region
    $region10: #{tpu_custom_call.1} parent=1 // pred_check
      _
    $region11: #{tpu_custom_call.1} parent=1 // pred_check_branch
      %37 = sbr.rel (0) target = $region13
    $region12: #{tpu_custom_call.1} parent=1 // pred_region
      %38 = dma.done [#allocation4], 128
    $region13: #{tpu_custom_call.1} parent=1 // pred_fallthru
      _
    // Predicated region
    $region14: #{tpu_custom_call.1} parent=1 // pred_check
      _
    $region15: #{tpu_custom_call.1} parent=1 // pred_check_branch
      %40 = sbr.rel (0) target = $region17
    $region16: #{tpu_custom_call.1} parent=1 // pred_region
      %41 = dma.done [#allocation7], 128
    $region17: #{tpu_custom_call.1} parent=1 // pred_fallthru
      _
    %s42 = sadd.s32 0, 0
    %s43 = sadd.s32 0, 0
    %p44 = scmp.eq.s32.totalorder 0, 0
    // Predicated region
    $region18: #{tpu_custom_call.1} parent=1 // pred_check
      %p45 = pneg %p44
    $region19: #{tpu_custom_call.1} parent=1 // pred_check_branch
      %47 = sbr.rel (%p45) target = $region21
    $region20: #{tpu_custom_call.1} parent=1 // pred_region
      %48 = vst [vmem:[#allocation2] sm:$0xff] 0.0
    $region21: #{tpu_custom_call.1} parent=1 // pred_fallthru
      _
    %v49 = vld [vmem:[#allocation3] sm:$0xff]
    %v50 = vld [vmem:[#allocation6] sm:$0xff]
    %v51 = vlaneseq
    %v52 = vand.u32 %v51, 127
    %53 = vset.pattern.permute.xlu0 0
    %54 = vperm.xlu0 %53, %v50
    %v55 = vpop.permute.xlu0 %54
    %vm56 = vcmp.eq.s32.totalorder %v52, %v55
    %57 = vset.pattern.permute.xlu0 1
    %58 = vperm.xlu0 %57, %v50
    %v59 = vpop.permute.xlu0 %58
    %vm60 = vcmp.eq.s32.totalorder %v52, %v59
    %vm61 = vmor %vm56, %vm60
    %62 = vset.pattern.permute.xlu0 2
    %63 = vperm.xlu0 %62, %v50
    %v64 = vpop.permute.xlu0 %63
    %vm65 = vcmp.eq.s32.totalorder %v52, %v64
    %vm66 = vmor %vm61, %vm65
    %67 = vset.pattern.permute.xlu0 3
    %68 = vperm.xlu0 %67, %v50
    %v69 = vpop.permute.xlu0 %68
    %vm70 = vcmp.eq.s32.totalorder %v52, %v69
    %vm71 = vmor %vm66, %vm70
    %72 = vset.pattern.permute.xlu0 4
    %73 = vperm.xlu0 %72, %v50
    %v74 = vpop.permute.xlu0 %73
    %vm75 = vcmp.eq.s32.totalorder %v52, %v74
    %vm76 = vmor %vm71, %vm75
    %77 = vset.pattern.permute.xlu0 5
    %78 = vperm.xlu0 %77, %v50
    %v79 = vpop.permute.xlu0 %78
    %vm80 = vcmp.eq.s32.totalorder %v52, %v79
    %vm81 = vmor %vm76, %vm80
    %82 = vset.pattern.permute.xlu0 6
    %83 = vperm.xlu0 %82, %v50
    %v84 = vpop.permute.xlu0 %83
    %vm85 = vcmp.eq.s32.totalorder %v52, %v84
    %vm86 = vmor %vm81, %vm85
    %87 = vset.pattern.permute.xlu0 7
    %88 = vperm.xlu0 %87, %v50
    %v89 = vpop.permute.xlu0 %88
    %vm90 = vcmp.eq.s32.totalorder %v52, %v89
    %vm91 = vmor %vm86, %vm90
    %v92 = vld [vmem:[#allocation2] sm:$0xff]
    %v93 = vsel %vm91, %v49, 0.0
    %v94 = vadd.f32 %v92, %v93
    %95 = vst [vmem:[#allocation2] sm:$0xff] %v94
    // Predicated region
    $region22: #{tpu_custom_call.1} parent=1 // pred_check
      %p96 = pneg %p44
    $region23: #{tpu_custom_call.1} parent=1 // pred_check_branch
      %98 = sbr.rel (%p96) target = $region25
    $region24: #{tpu_custom_call.1} parent=1 // pred_region
      %v99 = vld [vmem:[#allocation2] sm:$0xff]
      %100 = vadd.xlane.f32.xlu0 %v99
      %v101 = vpop.xlane.xlu0 %100
      %v102 = vrot.slane %v101, 4
      %v103 = vadd.f32 %v101, %v102
      %v104 = vrot.slane %v103, 2
      %v105 = vadd.f32 %v103, %v104
      %v106 = vrot.slane %v105, 1
      %v107 = vadd.f32 %v105, %v106
      %s108 = vtos %v107
      %s109 = smul.f32 %s108, -0.125
      %s110 = scalar_lea.smem [#allocation8], 0
      %111 = sst [smem:[%s110]] %s109
    $region25: #{tpu_custom_call.1} parent=1 // pred_fallthru
      _
    // Predicated region
    $region26: #{tpu_custom_call.1} parent=1 // pred_check
      _
    $region27: #{tpu_custom_call.1} parent=1 // pred_check_branch
      %113 = sbr.rel (0) target = $region29
    $region28: #{tpu_custom_call.1} parent=1 // pred_region
      %s115 = ssub.s32 16, 16
      %116 = vsyncadd [#allocation5], %s115
      %119 = dma.smem_to_hbm [#allocation8], 16, %s2, [#allocation5]
    $region29: #{tpu_custom_call.1} parent=1 // pred_fallthru
      _
    // Predicated region
    $region30: #{tpu_custom_call.1} parent=1 // pred_check
      _
    $region31: #{tpu_custom_call.1} parent=1 // pred_check_branch
      %121 = sbr.rel (0) target = $region33
    $region32: #{tpu_custom_call.1} parent=1 // pred_region
      %122 = dma.done [#allocation5], 16
    $region33: #{tpu_custom_call.1} parent=1 // pred_fallthru
      _
    %123 = sfence
    %124 = vsyncpa [#allocation4], 1
    %125 = vsyncpa [#allocation7], 1
    %126 = vsyncpa [#allocation5], 1

</llo_original>
